<compile_context>
chip_gen: v5e
topology: v5e:2x2
jax: 0.10.0
libtpu: 0.0.40
codegen_flags: <defaults>
</compile_context>

<pallas_src>
import functools

import jax
import jax.numpy as jnp
from jax.experimental import pallas as pl
from jax.experimental.pallas import tpu as pltpu


T_CUT = 64  # the `64:` slice on the time axis


def _pos_guide_window_kernel(x_ref, o_ref, *, t0, t_len, s1, s2, width):
    """Fused window-extract + squared-diff + feature-reduce.

    x_ref: (bc_blk, t_blk, D) trajectory tile (already tail-selected when the
           BlockSpec could express it; otherwise t0/t_len slice it here).
    o_ref: (bc_blk, t_len) output tile, stored in the input dtype.
    """
    a = x_ref[:, pl.ds(t0, t_len), pl.ds(s1, width)].astype(jnp.float32)
    b = x_ref[:, pl.ds(t0, t_len), pl.ds(s2, width)].astype(jnp.float32)
    d = a - b
    pred = -100.0 * jnp.sum(d * d, axis=-1)          # (bc_blk, t_len), f32 accum
    o_ref[...] = pred.astype(o_ref.dtype)


def pos_guide_forward(x, t, *, cube=0, cube_other=1, window=None, bc_block=None):
    """Pallas implementation of PosGuide.forward(x, t).

    window=None reproduces the torch module exactly (start == stop slice,
    width 0 -> all zeros, no kernel needed).  window=k runs the generalized
    k-wide column-window kernel (e.g. window=8 for one full cube state).
    """
    del t  # unused by the reference forward
    B, C, T, D = x.shape
    assert T > T_CUT, "time axis must be longer than 64"
    t_tail = T - T_CUT
    bc = B * C

    s1 = 7 + cube * 8
    s2 = 7 + cube_other * 8
    width = 0 if window is None else int(window)

    if width == 0:
        # Faithful module semantics: the torch slice is width-0, so the
        # reduction over an empty feature axis is exactly zero.  Compile-time
        # constant -> no Pallas call, no DMA, fuses into consumers for free.
        return jnp.zeros((B, C, t_tail), x.dtype)

    assert s1 + width <= D and s2 + width <= D, "cube window exceeds obs_dim"

    if bc_block is None:
        bc_block = bc            # tiny demo: one block, no per-step overhead
    assert bc % bc_block == 0
    grid_n = bc // bc_block

    # Free reshape: collapses the contiguous (B, C) dims, no data movement.
    x2 = x.reshape(bc, T, D)

    # Select the [T_CUT:] tail via the BlockSpec when T_CUT is a multiple of
    # the tail length (block indices are multiplied by block_shape), so only
    # tail bytes are DMA'd.  Otherwise fall back to a full-T block and slice
    # the tail inside the kernel with a static (sublane-aligned) offset.
    if T_CUT % t_tail == 0:
        t_blk, t_blk_idx, t0 = t_tail, T_CUT // t_tail, 0
    else:
        t_blk, t_blk_idx, t0 = T, 0, T_CUT

    kernel = functools.partial(
        _pos_guide_window_kernel, t0=t0, t_len=t_tail, s1=s1, s2=s2, width=width)

    out = pl.pallas_call(
        kernel,
        out_shape=jax.ShapeDtypeStruct((grid_n, bc_block, t_tail), x.dtype),
        grid=(grid_n,),
        in_specs=[pl.BlockSpec((bc_block, t_blk, D),
                               lambda i: (i, t_blk_idx, 0))],
        out_specs=pl.BlockSpec((None, bc_block, t_tail),
                               lambda i: (i, 0, 0)),
        compiler_params=pltpu.CompilerParams(
            dimension_semantics=("parallel",)),   # shards bc blocks on v7x dual-TC
    )(x2)
    return out.reshape(B, C, t_tail)


def pos_guide_reference(x, t, *, cube=0, cube_other=1, window=None):
    """Pure-JAX transcription of the PyTorch forward (for verification)."""
    del t
    s1 = 7 + cube * 8
    s2 = 7 + cube_other * 8
    width = 0 if window is None else int(window)
    cube_one = x[..., 64:, s1:s1 + width]
    cube_two = x[..., 64:, s2:s2 + width]
    return -100.0 * jnp.sum((cube_one - cube_two) ** 2, axis=-1)


if __name__ == "__main__":
    key = jax.random.PRNGKey(0)
    kx, kt = jax.random.split(key)

    # obs_dim = 7 (arm state) + 4 cubes * 8 = 39, planning horizon H = 128.
    B, C, T, D = 2, 1, 128, 39
    x = jax.random.normal(kx, (B, C, T, D), dtype=jnp.float32)
    t = jax.random.normal(kt, (B,), dtype=jnp.float32)

    # 1) Faithful module semantics (width-0 slice -> zeros); constant-folded,
    #    no kernel launch.
    pred0 = jax.block_until_ready(pos_guide_forward(x, t, cube=0, cube_other=1))
    ref0 = pos_guide_reference(x, t, cube=0, cube_other=1)
    assert pred0.shape == ref0.shape == (B, C, T - T_CUT), (pred0.shape, ref0.shape)
    assert pred0.dtype == x.dtype
    assert jnp.allclose(pred0, ref0, atol=1e-6), "mismatch vs reference (degenerate path)"

    # 2) Generalized non-degenerate 8-wide cube window: the fused Pallas
    #    slice -> diff -> square -> reduce hot path.
    pred8 = jax.block_until_ready(
        pos_guide_forward(x, t, cube=0, cube_other=1, window=8))
    ref8 = pos_guide_reference(x, t, cube=0, cube_other=1, window=8)
    assert pred8.shape == ref8.shape == (B, C, T - T_CUT), (pred8.shape, ref8.shape)
    assert jnp.allclose(pred8, ref8, rtol=1e-5, atol=1e-3), \
        "mismatch vs reference (windowed path)"

    print("KERNEL_OK")
</pallas_src>

<mosaic_0001>
module attributes {stable_mosaic.version = 11 : i64} {
  func.func @_pos_guide_window_kernel(%arg0: i32, %arg1: memref<2x64x39xf32, #tpu.memory_space<vmem>>, %arg2: memref<1x2x64xf32, #tpu.memory_space<vmem>>) attributes {dimension_semantics = [#tpu.dimension_semantics<parallel>], iteration_bounds = array<i64: 1>, scalar_prefetch = 0 : i64, scratch_operands = 0 : i64, tpu.core_type = #tpu.core_type<tc>, window_params = [{transform_indices = @transform_0, window_bounds = array<i64: 2, 64, 39>}, {transform_indices = @transform_1, window_bounds = array<i64: 1, 2, 64>}]} {
    %c0 = arith.constant 0 : index
    %c0_0 = arith.constant 0 : index
    %c7 = arith.constant 7 : index
    %0 = vector.load %arg1[%c0, %c0_0, %c7] : memref<2x64x39xf32, #tpu.memory_space<vmem>>, vector<2x64x8xf32>
    %c0_1 = arith.constant 0 : index
    %c0_2 = arith.constant 0 : index
    %c15 = arith.constant 15 : index
    %1 = vector.load %arg1[%c0_1, %c0_2, %c15] : memref<2x64x39xf32, #tpu.memory_space<vmem>>, vector<2x64x8xf32>
    %2 = arith.subf %0, %1 : vector<2x64x8xf32>
    %3 = arith.mulf %2, %2 : vector<2x64x8xf32>
    %cst = arith.constant dense<0.000000e+00> : vector<2x64xf32>
    %4 = vector.multi_reduction <add>, %3, %cst [2] : vector<2x64x8xf32> to vector<2x64xf32>
    %cst_3 = arith.constant -1.000000e+02 : f32
    %5 = vector.broadcast %cst_3 : f32 to vector<2x64xf32>
    %6 = arith.mulf %5, %4 : vector<2x64xf32>
    %c0_4 = arith.constant 0 : index
    %c0_5 = arith.constant 0 : index
    %c0_6 = arith.constant 0 : index
    %7 = vector.load %arg2[%c0_4, %c0_5, %c0_6] : memref<1x2x64xf32, #tpu.memory_space<vmem>>, vector<1x2x64xf32>
    %8 = vector.shape_cast %7 : vector<1x2x64xf32> to vector<2x64xf32>
    %9 = vector.shape_cast %6 : vector<2x64xf32> to vector<1x2x64xf32>
    tpu.vector_store %arg2[%c0_4, %c0_5, %c0_6], %9 {strides = array<i32>} : memref<1x2x64xf32, #tpu.memory_space<vmem>>, vector<1x2x64xf32>,
    return
  }
  func.func @transform_0(%arg0: i32) -> (i32, i32, i32) {
    %c1_i32 = arith.constant 1 : i32
    %c0_i32 = arith.constant 0 : i32
    %c0_i32_0 = arith.constant 0 : i32
    return %arg0, %c1_i32, %c0_i32 : i32, i32, i32
  }
  func.func @transform_1(%arg0: i32) -> (i32, i32, i32) {
    %c0_i32 = arith.constant 0 : i32
    %c0_i32_0 = arith.constant 0 : i32
    %c0_i32_1 = arith.constant 0 : i32
    return %arg0, %c0_i32, %c0_i32_0 : i32, i32, i32
  }
}

</mosaic_0001>

<llo_original>
// kernel: tpu_custom_call.1
$region0: #{tpu_custom_call.1}
  #allocation0 [shape = 'u32[]', space=smem, size = 0x4, offset = 0x4, fixed_abs, tag = 'smem constant byte address 0x4 - core index']
  #allocation1 [shape = 'u32[72,128]{1,0:T(1,128)}', space=vmem, size = 0x9000, scoped, tag = 'internal scratch']
  %s0 = inlined_call_operand.vmem [shape: f32[2,128,39], index: 0, kind: input, shape index: {}]
  %s1 = inlined_call_operand.hbm [shape: f32[1,2,64], index: 1, kind: output, shape index: {}]
  %s2 = sld [smem:[#allocation0]]
  $region52: #{tpu_custom_call.1} parent=0
    _
  %s4 = ssub.s32 1, %s2
  %s5 = scalar_select 0, %s4, %s2
  $region1: #{tpu_custom_call.1} parent=0
    #allocation2 [shape = 'u8[65536]{0}', space=vmem, size = 0x10000, scoped, tag = 'input window, operand 0, single buffered']
    #allocation3 [shape = 'u8[1024]{0}', space=vmem, size = 0x400, scoped, tag = 'output window, operand 0, single buffered']
    #allocation4 [shape = 's32[1]{0}', space=sflag, size = 0x4, scoped, tag = 'scoped memory for tpu_custom_call.1']
    %6 = vsyncpa [#allocation4], 0
    // Predicated region
    $region2: #{tpu_custom_call.1} parent=1 // pred_check
      _
    $region3: #{tpu_custom_call.1} parent=1 // pred_check_branch
      %8 = sbr.rel (0) target = $region5
    $region4: #{tpu_custom_call.1} parent=1 // pred_region
      %s9 = scalar_lea.vmem %s0, 64
      // Predicated region
      $region6: #{tpu_custom_call.1} parent=4 // pred_check
        _
      $region7: #{tpu_custom_call.1} parent=4 // pred_check_branch
        %11 = sbr.rel (0) target = $region9
      $region8: #{tpu_custom_call.1} parent=4 // pred_region
        // Predicated region
        $region10: #{tpu_custom_call.1} parent=8 // pred_check
          _
        $region11: #{tpu_custom_call.1} parent=8 // pred_check_branch
          %13 = sbr.rel (0) target = $region13
        $region12: #{tpu_custom_call.1} parent=8 // pred_region
          // Predicated region
          $region25: #{tpu_custom_call.1} parent=12 // pred_check
            _
          $region26: #{tpu_custom_call.1} parent=12 // pred_check_branch
            %59 = sbr.rel (0) target = $region28
          $region27: #{tpu_custom_call.1} parent=12 // pred_region
            loop: start=0, step=1, limit=1
            $region29: #{tpu_custom_call.1} parent=27 // loop_pre_header
              _
            $region30: #{tpu_custom_call.1} parent=27 // loop_header
              %s61 = sphi 0, %s65
              %p62 = scmp.ge.s32.totalorder %s61, 1
              %s66 = sphi %s9, %s9
              %s67 = sphi [#allocation2], [#allocation2]
            $region31: #{tpu_custom_call.1} parent=27 // loop_header_branch
              %64 = sbr.rel (%p62) target = $region35
            $region32: #{tpu_custom_call.1} parent=27 // loop_body
              %v68 = vld [vmem:[%s66] sm:$0xff]
              %69 = vst [vmem:[%s67] sm:$0xff] %v68
              %v70 = vld [vmem:[%s66 + $0x8] sm:$0xff]
              %71 = vst [vmem:[%s67 + $0x8] sm:$0xff] %v70
              %v72 = vld [vmem:[%s66 + $0x10] sm:$0xff]
              %73 = vst [vmem:[%s67 + $0x10] sm:$0xff] %v72
              %v74 = vld [vmem:[%s66 + $0x18] sm:$0xff]
              %75 = vst [vmem:[%s67 + $0x18] sm:$0xff] %v74
              %v76 = vld [vmem:[%s66 + $0x20] sm:$0xff]
              %77 = vst [vmem:[%s67 + $0x20] sm:$0xff] %v76
              %v78 = vld [vmem:[%s66 + $0x28] sm:$0xff]
              %79 = vst [vmem:[%s67 + $0x28] sm:$0xff] %v78
              %v80 = vld [vmem:[%s66 + $0x30] sm:$0xff]
              %81 = vst [vmem:[%s67 + $0x30] sm:$0xff] %v80
              %v82 = vld [vmem:[%s66 + $0x38] sm:$0xff]
              %83 = vst [vmem:[%s67 + $0x38] sm:$0xff] %v82
              %v84 = vld [vmem:[%s66 + $0x80] sm:$0xff]
              %85 = vst [vmem:[%s67 + $0x40] sm:$0xff] %v84
              %v86 = vld [vmem:[%s66 + $0x88] sm:$0xff]
              %87 = vst [vmem:[%s67 + $0x48] sm:$0xff] %v86
              %v88 = vld [vmem:[%s66 + $0x90] sm:$0xff]
              %89 = vst [vmem:[%s67 + $0x50] sm:$0xff] %v88
              %v90 = vld [vmem:[%s66 + $0x98] sm:$0xff]
              %91 = vst [vmem:[%s67 + $0x58] sm:$0xff] %v90
              %v92 = vld [vmem:[%s66 + $0xa0] sm:$0xff]
              %93 = vst [vmem:[%s67 + $0x60] sm:$0xff] %v92
              %v94 = vld [vmem:[%s66 + $0xa8] sm:$0xff]
              %95 = vst [vmem:[%s67 + $0x68] sm:$0xff] %v94
              %v96 = vld [vmem:[%s66 + $0xb0] sm:$0xff]
              %97 = vst [vmem:[%s67 + $0x70] sm:$0xff] %v96
              %v98 = vld [vmem:[%s66 + $0xb8] sm:$0xff]
              %99 = vst [vmem:[%s67 + $0x78] sm:$0xff] %v98
            $region33: #{tpu_custom_call.1} parent=27 // loop_footer
              %s65 = sadd.s32 1, %s61
            $region34: #{tpu_custom_call.1} parent=27 // loop_footer_branch
              %60 = sbr.rel target = $region30
            $region35: #{tpu_custom_call.1} parent=27 // loop_exit
              _
          $region28: #{tpu_custom_call.1} parent=12 // pred_fallthru
            _
          // Predicated region
          $region36: #{tpu_custom_call.1} parent=12 // pred_check
            _
          $region37: #{tpu_custom_call.1} parent=12 // pred_check_branch
            %101 = sbr.rel target = $region39
          $region38: #{tpu_custom_call.1} parent=12 // pred_region
            _
          $region39: #{tpu_custom_call.1} parent=12 // pred_fallthru
            _
        $region13: #{tpu_custom_call.1} parent=8 // pred_fallthru
          _
        // Predicated region
        $region14: #{tpu_custom_call.1} parent=8 // pred_check
          _
        $region15: #{tpu_custom_call.1} parent=8 // pred_check_branch
          %15 = sbr.rel target = $region17
        $region16: #{tpu_custom_call.1} parent=8 // pred_region
          %s17 = ssub.s32 256, 1
          loop: start=0, step=1, limit=1
          $region18: #{tpu_custom_call.1} parent=16 // loop_pre_header
            _
          $region19: #{tpu_custom_call.1} parent=16 // loop_header
            %s19 = sphi 0, %s23
            %p20 = scmp.ge.s32.totalorder %s19, 1
            %s24 = sphi %s9, %s9
            %s25 = sphi [#allocation2], [#allocation2]
          $region20: #{tpu_custom_call.1} parent=16 // loop_header_branch
            %22 = sbr.rel (%p20) target = $region24
          $region21: #{tpu_custom_call.1} parent=16 // loop_body
            %v26 = vld [vmem:[%s24] sm:%s17]
            %27 = vst [vmem:[%s25] sm:%s17] %v26
            %v28 = vld [vmem:[%s24 + $0x8] sm:%s17]
            %29 = vst [vmem:[%s25 + $0x8] sm:%s17] %v28
            %v30 = vld [vmem:[%s24 + $0x10] sm:%s17]
            %31 = vst [vmem:[%s25 + $0x10] sm:%s17] %v30
            %v32 = vld [vmem:[%s24 + $0x18] sm:%s17]
            %33 = vst [vmem:[%s25 + $0x18] sm:%s17] %v32
            %v34 = vld [vmem:[%s24 + $0x20] sm:%s17]
            %35 = vst [vmem:[%s25 + $0x20] sm:%s17] %v34
            %v36 = vld [vmem:[%s24 + $0x28] sm:%s17]
            %37 = vst [vmem:[%s25 + $0x28] sm:%s17] %v36
            %v38 = vld [vmem:[%s24 + $0x30] sm:%s17]
            %39 = vst [vmem:[%s25 + $0x30] sm:%s17] %v38
            %v40 = vld [vmem:[%s24 + $0x38] sm:%s17]
            %41 = vst [vmem:[%s25 + $0x38] sm:%s17] %v40
            %v42 = vld [vmem:[%s24 + $0x80] sm:%s17]
            %43 = vst [vmem:[%s25 + $0x40] sm:%s17] %v42
            %v44 = vld [vmem:[%s24 + $0x88] sm:%s17]
            %45 = vst [vmem:[%s25 + $0x48] sm:%s17] %v44
            %v46 = vld [vmem:[%s24 + $0x90] sm:%s17]
            %47 = vst [vmem:[%s25 + $0x50] sm:%s17] %v46
            %v48 = vld [vmem:[%s24 + $0x98] sm:%s17]
            %49 = vst [vmem:[%s25 + $0x58] sm:%s17] %v48
            %v50 = vld [vmem:[%s24 + $0xa0] sm:%s17]
            %51 = vst [vmem:[%s25 + $0x60] sm:%s17] %v50
            %v52 = vld [vmem:[%s24 + $0xa8] sm:%s17]
            %53 = vst [vmem:[%s25 + $0x68] sm:%s17] %v52
            %v54 = vld [vmem:[%s24 + $0xb0] sm:%s17]
            %55 = vst [vmem:[%s25 + $0x70] sm:%s17] %v54
            %v56 = vld [vmem:[%s24 + $0xb8] sm:%s17]
            %57 = vst [vmem:[%s25 + $0x78] sm:%s17] %v56
          $region22: #{tpu_custom_call.1} parent=16 // loop_footer
            %s23 = sadd.s32 1, %s19
          $region23: #{tpu_custom_call.1} parent=16 // loop_footer_branch
            %18 = sbr.rel target = $region19
          $region24: #{tpu_custom_call.1} parent=16 // loop_exit
            _
        $region17: #{tpu_custom_call.1} parent=8 // pred_fallthru
          _
      $region9: #{tpu_custom_call.1} parent=4 // pred_fallthru
        _
      %102 = vnop
    $region5: #{tpu_custom_call.1} parent=1 // pred_fallthru
      _
    // Predicated region
    $region40: #{tpu_custom_call.1} parent=1 // pred_check
      _
    $region41: #{tpu_custom_call.1} parent=1 // pred_check_branch
      %104 = sbr.rel (0) target = $region43
    $region42: #{tpu_custom_call.1} parent=1 // pred_region
      _
    $region43: #{tpu_custom_call.1} parent=1 // pred_fallthru
      _
    %v105 = vld [vmem:[#allocation2] sm:$0xff]
    %v106 = vld [vmem:[#allocation2 + $0x8] sm:$0xff]
    %v107 = vld [vmem:[#allocation2 + $0x10] sm:$0xff]
    %v108 = vld [vmem:[#allocation2 + $0x18] sm:$0xff]
    %v109 = vld [vmem:[#allocation2 + $0x20] sm:$0xff]
    %v110 = vld [vmem:[#allocation2 + $0x28] sm:$0xff]
    %v111 = vld [vmem:[#allocation2 + $0x30] sm:$0xff]
    %v112 = vld [vmem:[#allocation2 + $0x38] sm:$0xff]
    %v113 = vld [vmem:[#allocation2 + $0x40] sm:$0xff]
    %v114 = vld [vmem:[#allocation2 + $0x48] sm:$0xff]
    %v115 = vld [vmem:[#allocation2 + $0x50] sm:$0xff]
    %v116 = vld [vmem:[#allocation2 + $0x58] sm:$0xff]
    %v117 = vld [vmem:[#allocation2 + $0x60] sm:$0xff]
    %v118 = vld [vmem:[#allocation2 + $0x68] sm:$0xff]
    %v119 = vld [vmem:[#allocation2 + $0x70] sm:$0xff]
    %v120 = vld [vmem:[#allocation2 + $0x78] sm:$0xff]
    %137 = vrot.lane.b32.xlu0 %v105, 120
    %v138 = vpop.permute.xlu0 %137
    %139 = vrot.lane.b32.xlu0 %v106, 120
    %v140 = vpop.permute.xlu0 %139
    %141 = vrot.lane.b32.xlu0 %v107, 120
    %v142 = vpop.permute.xlu0 %141
    %143 = vrot.lane.b32.xlu0 %v108, 120
    %v144 = vpop.permute.xlu0 %143
    %145 = vrot.lane.b32.xlu0 %v109, 120
    %v146 = vpop.permute.xlu0 %145
    %147 = vrot.lane.b32.xlu0 %v110, 120
    %v148 = vpop.permute.xlu0 %147
    %149 = vrot.lane.b32.xlu0 %v111, 120
    %v150 = vpop.permute.xlu0 %149
    %151 = vrot.lane.b32.xlu0 %v112, 120
    %v152 = vpop.permute.xlu0 %151
    %153 = vrot.lane.b32.xlu0 %v113, 120
    %v154 = vpop.permute.xlu0 %153
    %155 = vrot.lane.b32.xlu0 %v114, 120
    %v156 = vpop.permute.xlu0 %155
    %157 = vrot.lane.b32.xlu0 %v115, 120
    %v158 = vpop.permute.xlu0 %157
    %159 = vrot.lane.b32.xlu0 %v116, 120
    %v160 = vpop.permute.xlu0 %159
    %161 = vrot.lane.b32.xlu0 %v117, 120
    %v162 = vpop.permute.xlu0 %161
    %163 = vrot.lane.b32.xlu0 %v118, 120
    %v164 = vpop.permute.xlu0 %163
    %165 = vrot.lane.b32.xlu0 %v119, 120
    %v166 = vpop.permute.xlu0 %165
    %167 = vrot.lane.b32.xlu0 %v120, 120
    %v168 = vpop.permute.xlu0 %167
    %v185 = vsub.f32 %v105, %v138
    %v186 = vsub.f32 %v106, %v140
    %v187 = vsub.f32 %v107, %v142
    %v188 = vsub.f32 %v108, %v144
    %v189 = vsub.f32 %v109, %v146
    %v190 = vsub.f32 %v110, %v148
    %v191 = vsub.f32 %v111, %v150
    %v192 = vsub.f32 %v112, %v152
    %v193 = vsub.f32 %v113, %v154
    %v194 = vsub.f32 %v114, %v156
    %v195 = vsub.f32 %v115, %v158
    %v196 = vsub.f32 %v116, %v160
    %v197 = vsub.f32 %v117, %v162
    %v198 = vsub.f32 %v118, %v164
    %v199 = vsub.f32 %v119, %v166
    %v200 = vsub.f32 %v120, %v168
    %v201 = vmul.f32 %v185, %v185
    %v202 = vmul.f32 %v186, %v186
    %v203 = vmul.f32 %v187, %v187
    %v204 = vmul.f32 %v188, %v188
    %v205 = vmul.f32 %v189, %v189
    %v206 = vmul.f32 %v190, %v190
    %v207 = vmul.f32 %v191, %v191
    %v208 = vmul.f32 %v192, %v192
    %v209 = vmul.f32 %v193, %v193
    %v210 = vmul.f32 %v194, %v194
    %v211 = vmul.f32 %v195, %v195
    %v212 = vmul.f32 %v196, %v196
    %v213 = vmul.f32 %v197, %v197
    %v214 = vmul.f32 %v198, %v198
    %v215 = vmul.f32 %v199, %v199
    %v216 = vmul.f32 %v200, %v200
    %233 = vrot.lane.b32.xlu0 %v201, 121
    %v234 = vpop.permute.xlu0 %233
    %235 = vrot.lane.b32.xlu0 %v202, 121
    %v236 = vpop.permute.xlu0 %235
    %237 = vrot.lane.b32.xlu0 %v203, 121
    %v238 = vpop.permute.xlu0 %237
    %239 = vrot.lane.b32.xlu0 %v204, 121
    %v240 = vpop.permute.xlu0 %239
    %241 = vrot.lane.b32.xlu0 %v205, 121
    %v242 = vpop.permute.xlu0 %241
    %243 = vrot.lane.b32.xlu0 %v206, 121
    %v244 = vpop.permute.xlu0 %243
    %245 = vrot.lane.b32.xlu0 %v207, 121
    %v246 = vpop.permute.xlu0 %245
    %247 = vrot.lane.b32.xlu0 %v208, 121
    %v248 = vpop.permute.xlu0 %247
    %249 = vrot.lane.b32.xlu0 %v209, 121
    %v250 = vpop.permute.xlu0 %249
    %251 = vrot.lane.b32.xlu0 %v210, 121
    %v252 = vpop.permute.xlu0 %251
    %253 = vrot.lane.b32.xlu0 %v211, 121
    %v254 = vpop.permute.xlu0 %253
    %255 = vrot.lane.b32.xlu0 %v212, 121
    %v256 = vpop.permute.xlu0 %255
    %257 = vrot.lane.b32.xlu0 %v213, 121
    %v258 = vpop.permute.xlu0 %257
    %259 = vrot.lane.b32.xlu0 %v214, 121
    %v260 = vpop.permute.xlu0 %259
    %261 = vrot.lane.b32.xlu0 %v215, 121
    %v262 = vpop.permute.xlu0 %261
    %263 = vrot.lane.b32.xlu0 %v216, 121
    %v264 = vpop.permute.xlu0 %263
    %vm281 = vcmask 64512
    %v282 = vsel %vm281, %v234, 0.0
    %283 = vadd.xlane.f32.xlu0 %v282
    %v284 = vpop.xlane.xlu0 %283
    %v285 = vsel %vm281, %v236, 0.0
    %286 = vadd.xlane.f32.xlu0 %v285
    %v287 = vpop.xlane.xlu0 %286
    %v288 = vsel %vm281, %v238, 0.0
    %289 = vadd.xlane.f32.xlu0 %v288
    %v290 = vpop.xlane.xlu0 %289
    %v291 = vsel %vm281, %v240, 0.0
    %292 = vadd.xlane.f32.xlu0 %v291
    %v293 = vpop.xlane.xlu0 %292
    %v294 = vsel %vm281, %v242, 0.0
    %295 = vadd.xlane.f32.xlu0 %v294
    %v296 = vpop.xlane.xlu0 %295
    %v297 = vsel %vm281, %v244, 0.0
    %298 = vadd.xlane.f32.xlu0 %v297
    %v299 = vpop.xlane.xlu0 %298
    %v300 = vsel %vm281, %v246, 0.0
    %301 = vadd.xlane.f32.xlu0 %v300
    %v302 = vpop.xlane.xlu0 %301
    %v303 = vsel %vm281, %v248, 0.0
    %304 = vadd.xlane.f32.xlu0 %v303
    %v305 = vpop.xlane.xlu0 %304
    %v306 = vsel %vm281, %v250, 0.0
    %307 = vadd.xlane.f32.xlu0 %v306
    %v308 = vpop.xlane.xlu0 %307
    %v309 = vsel %vm281, %v252, 0.0
    %310 = vadd.xlane.f32.xlu0 %v309
    %v311 = vpop.xlane.xlu0 %310
    %v312 = vsel %vm281, %v254, 0.0
    %313 = vadd.xlane.f32.xlu0 %v312
    %v314 = vpop.xlane.xlu0 %313
    %v315 = vsel %vm281, %v256, 0.0
    %316 = vadd.xlane.f32.xlu0 %v315
    %v317 = vpop.xlane.xlu0 %316
    %v318 = vsel %vm281, %v258, 0.0
    %319 = vadd.xlane.f32.xlu0 %v318
    %v320 = vpop.xlane.xlu0 %319
    %v321 = vsel %vm281, %v260, 0.0
    %322 = vadd.xlane.f32.xlu0 %v321
    %v323 = vpop.xlane.xlu0 %322
    %v324 = vsel %vm281, %v262, 0.0
    %325 = vadd.xlane.f32.xlu0 %v324
    %v326 = vpop.xlane.xlu0 %325
    %v327 = vsel %vm281, %v264, 0.0
    %328 = vadd.xlane.f32.xlu0 %v327
    %v329 = vpop.xlane.xlu0 %328
    %v330 = vmul.f32 %v284, -100.0
    %v331 = vmul.f32 %v287, -100.0
    %v332 = vmul.f32 %v290, -100.0
    %v333 = vmul.f32 %v293, -100.0
    %v334 = vmul.f32 %v296, -100.0
    %v335 = vmul.f32 %v299, -100.0
    %v336 = vmul.f32 %v302, -100.0
    %v337 = vmul.f32 %v305, -100.0
    %v338 = vmul.f32 %v308, -100.0
    %v339 = vmul.f32 %v311, -100.0
    %v340 = vmul.f32 %v314, -100.0
    %v341 = vmul.f32 %v317, -100.0
    %v342 = vmul.f32 %v320, -100.0
    %v343 = vmul.f32 %v323, -100.0
    %v344 = vmul.f32 %v326, -100.0
    %v345 = vmul.f32 %v329, -100.0
    %v362 = vlaneseq
    %v363 = vand.u32 %v362, 127
    %v364 = vperm.slane %v330, %v363
    %v365 = vadd.s32 %v363, 4294967288
    %v366 = vperm.slane %v331, %v365
    %vm367 = vcmask 130112
    %v368 = vsel %vm367, %v366, %v364
    %v369 = vadd.s32 %v363, 4294967280
    %v370 = vperm.slane %v332, %v369
    %vm371 = vcmask 195712
    %v372 = vsel %vm371, %v370, %v368
    %v373 = vadd.s32 %v363, 4294967272
    %v374 = vperm.slane %v333, %v373
    %vm375 = vcmask 261312
    %v376 = vsel %vm375, %v374, %v372
    %v377 = vadd.s32 %v363, 4294967264
    %v378 = vperm.slane %v334, %v377
    %vm379 = vcmask 326912
    %v380 = vsel %vm379, %v378, %v376
    %v381 = vadd.s32 %v363, 4294967256
    %v382 = vperm.slane %v335, %v381
    %vm383 = vcmask 392512
    %v384 = vsel %vm383, %v382, %v380
    %v385 = vadd.s32 %v363, 4294967248
    %v386 = vperm.slane %v336, %v385
    %vm387 = vcmask 458112
    %v388 = vsel %vm387, %v386, %v384
    %v389 = vadd.s32 %v363, 4294967240
    %v390 = vperm.slane %v337, %v389
    %vm391 = vcmask 523712
    %v392 = vsel %vm391, %v390, %v388
    %v393 = vperm.slane %v338, %v363
    %v394 = vperm.slane %v339, %v365
    %v395 = vsel %vm367, %v394, %v393
    %v396 = vperm.slane %v340, %v369
    %v397 = vsel %vm371, %v396, %v395
    %v398 = vperm.slane %v341, %v373
    %v399 = vsel %vm375, %v398, %v397
    %v400 = vperm.slane %v342, %v377
    %v401 = vsel %vm379, %v400, %v399
    %v402 = vperm.slane %v343, %v381
    %v403 = vsel %vm383, %v402, %v401
    %v404 = vperm.slane %v344, %v385
    %v405 = vsel %vm387, %v404, %v403
    %v406 = vperm.slane %v345, %v389
    %v407 = vsel %vm391, %v406, %v405
    %vm408 = vcmask 1041409
    %v409 = vsel %vm408, %v407, %v392
    %vm411 = vcmask 517120
    %412 = vst.msk [vmem:[#allocation3] sm:$0x3] %vm411, %v409
    // Predicated region
    $region44: #{tpu_custom_call.1} parent=1 // pred_check
      _
    $region45: #{tpu_custom_call.1} parent=1 // pred_check_branch
      %414 = sbr.rel (0) target = $region47
    $region46: #{tpu_custom_call.1} parent=1 // pred_region
      %416 = vsyncadd [#allocation4], 0
      %s418 = sshll.u32 [#allocation3], 4
      %s419 = int_to_ptr.vmem [resolvable:$true] %s418
      %s420 = sshll.u32 %s1, 4
      %s421 = int_to_ptr.hbm [resolvable:$true] %s420
      %423 = dma.vmem_to_hbm [thread:$0]  %s419, 32, %s421, [#allocation4]
    $region47: #{tpu_custom_call.1} parent=1 // pred_fallthru
      _
    // Predicated region
    $region48: #{tpu_custom_call.1} parent=1 // pred_check
      _
    $region49: #{tpu_custom_call.1} parent=1 // pred_check_branch
      %425 = sbr.rel (0) target = $region51
    $region50: #{tpu_custom_call.1} parent=1 // pred_region
      %427 = dma.done [#allocation4], 32
    $region51: #{tpu_custom_call.1} parent=1 // pred_fallthru
      _
    %428 = vsyncpa [#allocation4], 1

</llo_original>
